<compile_context>
chip_gen: v6e
topology: v6e:2x2x1
jax: 0.10.0
libtpu: 0.0.40
codegen_flags: <defaults>
</compile_context>

<pallas_src>
import functools
import math

import jax
import jax.numpy as jnp
from jax.experimental import pallas as pl
from jax.experimental.pallas import tpu as pltpu


def _round_up(x, m):
    return ((x + m - 1) // m) * m


def critic_kernel(st_ref, at_ref, w1s_ref, w1a_ref, b1_ref, w2_ref, b2_ref,
                  wq_ref, bq_ref, q_ref):
    # Layer 1 (fused concat): h1 = relu(W1s @ s + W1a @ a + b1) -> (fc1, TB).
    # Two MXU pushes (K=S and K=A) accumulated in f32.  (Fusing into a single
    # K=S+A push via an in-kernel sublane concat is a low-priority follow-up.)
    h1 = jnp.dot(w1s_ref[...], st_ref[...], preferred_element_type=jnp.float32)
    h1 = h1 + jnp.dot(w1a_ref[...], at_ref[...],
                      preferred_element_type=jnp.float32)
    h1 = jnp.maximum(h1 + b1_ref[...], 0.0)        # bias + ReLU in f32 (v5e-safe)

    # Layer 2: h2 = relu(W2 @ h1 + b2) -> (fc2, TB).
    h2 = jnp.dot(w2_ref[...], h1.astype(w2_ref.dtype),
                 preferred_element_type=jnp.float32)
    h2 = jnp.maximum(h2 + b2_ref[...], 0.0)

    # Output head: q = Wq @ h2 + bq -> (1, TB).  Batch is on the lane axis, so
    # this is a plain matmul (no XLU transpose) and the store is lane-dense.
    q = jnp.dot(wq_ref[...], h2.astype(wq_ref.dtype),
                preferred_element_type=jnp.float32)
    q_ref[...] = (q + bq_ref[...]).astype(q_ref.dtype)


def prepare_params(w1, b1, w2, b2, wq, bq, state_dims, *, dtype=jnp.float32):
    """One-time conversion of (in, out)-layout params to the kernel layout.

    Weight matrices are transposed to feature-major (out, in) and optionally
    cast to `dtype` (e.g. jnp.bfloat16 for v6e/v7x streaming); biases stay f32
    and are shaped (out, 1) for lane-broadcast against (out, TB) activations.
    """
    s = state_dims
    w1 = jnp.asarray(w1)
    return (jnp.asarray(w1[:s, :]).T.astype(dtype),          # (fc1, S)
            jnp.asarray(w1[s:, :]).T.astype(dtype),          # (fc1, A)
            jnp.asarray(b1, jnp.float32).reshape(-1, 1),     # (fc1, 1), f32
            jnp.asarray(w2).T.astype(dtype),                 # (fc2, fc1)
            jnp.asarray(b2, jnp.float32).reshape(-1, 1),     # (fc2, 1), f32
            jnp.asarray(wq).reshape(1, -1).astype(dtype),    # (1, fc2)
            jnp.asarray(bq, jnp.float32).reshape(1, 1))      # (1, 1),  f32


@functools.partial(jax.jit, static_argnames=("block_b",))
def critic_forward(state, action, params, *, block_b=2048):
    """Fused SAC CriticNetwork forward.  state (B,S), action (B,A) -> q (B,1)."""
    w1s_t, w1a_t, b1, w2_t, b2, wq_t, bq = params
    B, S = state.shape
    A = action.shape[1]
    fc1 = w1s_t.shape[0]
    fc2 = w2_t.shape[0]
    mxu_dtype = w1s_t.dtype

    # Batch tile (lane axis of every block).  block_b is rounded up to a
    # multiple of 128 so the tiled path is always lane-aligned.  For B <= cap
    # we run a single grid step with full-extent blocks: no 128-divisibility
    # requirement, no padding, one fixed per-step overhead.
    tb_cap = _round_up(max(int(block_b), 128), 128)
    if B <= tb_cap:
        tb, b_pad = B, B
    else:
        tb = tb_cap
        b_pad = _round_up(B, tb)

    # Batch-on-lane activation layout: (S, B)/(A, B).  bf16 mxu_dtype halves
    # the streamed activation bytes on v6e/v7x.
    st = state.astype(mxu_dtype).T                 # (S, B)
    at = action.astype(mxu_dtype).T                # (A, B)
    if b_pad != B:
        # Only reached for B > block_b with a ragged remainder; keep B a
        # multiple of 128 (or <= block_b) upstream to avoid this extra copy.
        st = jnp.pad(st, ((0, 0), (0, b_pad - B)))
        at = jnp.pad(at, ((0, 0), (0, b_pad - B)))

    grid = (b_pad // tb,)

    # Weights/biases: whole-array blocks with constant index_map -> fetched into
    # VMEM once and not re-DMA'd across grid steps (block index never changes).
    const = lambda arr: pl.BlockSpec(arr.shape, lambda i: (0,) * arr.ndim)

    param_bytes = sum(p.size * p.dtype.itemsize for p in params)
    act_bytes = b_pad * (S + A) * st.dtype.itemsize + b_pad * 4
    cost = pl.CostEstimate(
        flops=2 * b_pad * (S * fc1 + A * fc1 + fc1 * fc2 + fc2),
        transcendentals=0,
        bytes_accessed=param_bytes + act_bytes,
    )

    q_row = pl.pallas_call(
        critic_kernel,
        out_shape=jax.ShapeDtypeStruct((1, b_pad), jnp.float32),
        grid=grid,
        in_specs=[
            pl.BlockSpec((S, tb), lambda i: (0, i)),     # state tile  (S, TB)
            pl.BlockSpec((A, tb), lambda i: (0, i)),     # action tile (A, TB)
            const(w1s_t), const(w1a_t), const(b1),
            const(w2_t), const(b2), const(wq_t), const(bq),
        ],
        out_specs=pl.BlockSpec((1, tb), lambda i: (0, i)),
        compiler_params=pltpu.CompilerParams(
            dimension_semantics=("parallel",)),          # dual-TC on v7x when grid > 1
        cost_estimate=cost,
    )(st, at, *params)

    return q_row[0, :B, None]                            # (B, 1)


def init_linear(key, fan_in, fan_out):
    """PyTorch nn.Linear-style init: U(-1/sqrt(fan_in), 1/sqrt(fan_in))."""
    kw, kb = jax.random.split(key)
    bound = 1.0 / math.sqrt(fan_in)
    w = jax.random.uniform(kw, (fan_in, fan_out), jnp.float32, -bound, bound)
    b = jax.random.uniform(kb, (fan_out,), jnp.float32, -bound, bound)
    return w, b


if __name__ == "__main__":
    # Small shapes consistent with the module's constructor.
    batch = 8
    input_dims = (16,)       # state feature size
    n_actions = 4
    fc1_dims = 32
    fc2_dims = 32
    d_in = input_dims[0] + n_actions

    key = jax.random.PRNGKey(0)
    k_s, k_a, k1, k2, k3 = jax.random.split(key, 5)

    state = jax.random.normal(k_s, (batch, input_dims[0]), jnp.float32)
    action = jax.random.normal(k_a, (batch, n_actions), jnp.float32)

    w1, b1 = init_linear(k1, d_in, fc1_dims)
    w2, b2 = init_linear(k2, fc1_dims, fc2_dims)
    wq, bq = init_linear(k3, fc2_dims, 1)

    # Pure-JAX reference (identical to the PyTorch forward); `quant` lets us
    # build the bf16-quantized counterpart of the bf16-streaming kernel path.
    def reference(st_in, ac_in, quant=lambda v: v):
        x = jnp.concatenate([quant(st_in), quant(ac_in)], axis=1)
        h1 = jnp.maximum(x @ quant(w1) + b1, 0.0)
        h2 = jnp.maximum(quant(h1) @ quant(w2) + b2, 0.0)
        return quant(h2) @ quant(wq) + bq

    # --- f32 path (matches the PyTorch/f32 module semantics) ---
    params_f32 = prepare_params(w1, b1, w2, b2, wq, bq, input_dims[0])
    q = jax.block_until_ready(critic_forward(state, action, params_f32))
    q_ref = reference(state, action)
    assert q.shape == (batch, 1)
    assert jnp.allclose(q, q_ref, atol=5e-4, rtol=5e-4)

    # --- bf16-streaming path (v6e/v7x perf config) vs bf16-quantized reference ---
    params_bf16 = prepare_params(w1, b1, w2, b2, wq, bq, input_dims[0],
                                 dtype=jnp.bfloat16)
    q_bf = jax.block_until_ready(critic_forward(state, action, params_bf16))
    quant = lambda v: v.astype(jnp.bfloat16).astype(jnp.float32)
    q_ref_bf = reference(state, action, quant)
    assert q_bf.shape == (batch, 1)
    assert jnp.allclose(q_bf, q_ref_bf, atol=5e-3, rtol=5e-3)

    print("KERNEL_OK")
</pallas_src>

<mosaic_0001>
module attributes {stable_mosaic.version = 11 : i64} {
  func.func @critic_kernel(%arg0: i32, %arg1: memref<16x8xf32, #tpu.memory_space<vmem>>, %arg2: memref<4x8xf32, #tpu.memory_space<vmem>>, %arg3: memref<32x16xf32, #tpu.memory_space<vmem>>, %arg4: memref<32x4xf32, #tpu.memory_space<vmem>>, %arg5: memref<32x1xf32, #tpu.memory_space<vmem>>, %arg6: memref<32x32xf32, #tpu.memory_space<vmem>>, %arg7: memref<32x1xf32, #tpu.memory_space<vmem>>, %arg8: memref<1x32xf32, #tpu.memory_space<vmem>>, %arg9: memref<1x1xf32, #tpu.memory_space<vmem>>, %arg10: memref<1x8xf32, #tpu.memory_space<vmem>>) attributes {dimension_semantics = [#tpu.dimension_semantics<parallel>], iteration_bounds = array<i64: 1>, scalar_prefetch = 0 : i64, scratch_operands = 0 : i64, tpu.core_type = #tpu.core_type<tc>, window_params = [{transform_indices = @transform_0, window_bounds = array<i64: 16, 8>}, {transform_indices = @transform_1, window_bounds = array<i64: 4, 8>}, {pipeline_mode = #tpu.pipeline_mode<synchronous>, transform_indices = @transform_2, window_bounds = array<i64: 32, 16>}, {pipeline_mode = #tpu.pipeline_mode<synchronous>, transform_indices = @transform_3, window_bounds = array<i64: 32, 4>}, {pipeline_mode = #tpu.pipeline_mode<synchronous>, transform_indices = @transform_4, window_bounds = array<i64: 32, 1>}, {pipeline_mode = #tpu.pipeline_mode<synchronous>, transform_indices = @transform_5, window_bounds = array<i64: 32, 32>}, {pipeline_mode = #tpu.pipeline_mode<synchronous>, transform_indices = @transform_6, window_bounds = array<i64: 32, 1>}, {pipeline_mode = #tpu.pipeline_mode<synchronous>, transform_indices = @transform_7, window_bounds = array<i64: 1, 32>}, {pipeline_mode = #tpu.pipeline_mode<synchronous>, transform_indices = @transform_8, window_bounds = array<i64: 1, 1>}, {transform_indices = @transform_9, window_bounds = array<i64: 1, 8>}]} {
    %c0 = arith.constant 0 : index
    %c0_0 = arith.constant 0 : index
    %0 = vector.load %arg3[%c0, %c0_0] : memref<32x16xf32, #tpu.memory_space<vmem>>, vector<32x16xf32>
    %c0_1 = arith.constant 0 : index
    %c0_2 = arith.constant 0 : index
    %1 = vector.load %arg1[%c0_1, %c0_2] : memref<16x8xf32, #tpu.memory_space<vmem>>, vector<16x8xf32>
    %cst = arith.constant dense<0.000000e+00> : vector<32x8xf32>
    %2 = tpu.matmul %0, %1, %cst {dimension_numbers = #tpu.dot_dimension_numbers<[1], [0], [0], [1], [0, 0, 1, 1], [], []>} : vector<32x16xf32>, vector<16x8xf32>, vector<32x8xf32> -> vector<32x8xf32>
    %c0_3 = arith.constant 0 : index
    %c0_4 = arith.constant 0 : index
    %3 = vector.load %arg4[%c0_3, %c0_4] : memref<32x4xf32, #tpu.memory_space<vmem>>, vector<32x4xf32>
    %c0_5 = arith.constant 0 : index
    %c0_6 = arith.constant 0 : index
    %4 = vector.load %arg2[%c0_5, %c0_6] : memref<4x8xf32, #tpu.memory_space<vmem>>, vector<4x8xf32>
    %cst_7 = arith.constant dense<0.000000e+00> : vector<32x8xf32>
    %5 = tpu.matmul %3, %4, %cst_7 {dimension_numbers = #tpu.dot_dimension_numbers<[1], [0], [0], [1], [0, 0, 1, 1], [], []>} : vector<32x4xf32>, vector<4x8xf32>, vector<32x8xf32> -> vector<32x8xf32>
    %6 = arith.addf %2, %5 : vector<32x8xf32>
    %c0_8 = arith.constant 0 : index
    %c0_9 = arith.constant 0 : index
    %7 = vector.load %arg5[%c0_8, %c0_9] : memref<32x1xf32, #tpu.memory_space<vmem>>, vector<32x1xf32>
    %8 = vector.broadcast %7 : vector<32x1xf32> to vector<32x8xf32>
    %9 = arith.addf %6, %8 : vector<32x8xf32>
    %cst_10 = arith.constant 0.000000e+00 : f32
    %10 = vector.broadcast %cst_10 : f32 to vector<32x8xf32>
    %11 = arith.maximumf %9, %10 : vector<32x8xf32>
    %c0_11 = arith.constant 0 : index
    %c0_12 = arith.constant 0 : index
    %12 = vector.load %arg6[%c0_11, %c0_12] : memref<32x32xf32, #tpu.memory_space<vmem>>, vector<32x32xf32>
    %cst_13 = arith.constant dense<0.000000e+00> : vector<32x8xf32>
    %13 = tpu.matmul %12, %11, %cst_13 {dimension_numbers = #tpu.dot_dimension_numbers<[1], [0], [0], [1], [0, 0, 1, 1], [], []>} : vector<32x32xf32>, vector<32x8xf32>, vector<32x8xf32> -> vector<32x8xf32>
    %c0_14 = arith.constant 0 : index
    %c0_15 = arith.constant 0 : index
    %14 = vector.load %arg7[%c0_14, %c0_15] : memref<32x1xf32, #tpu.memory_space<vmem>>, vector<32x1xf32>
    %15 = vector.broadcast %14 : vector<32x1xf32> to vector<32x8xf32>
    %16 = arith.addf %13, %15 : vector<32x8xf32>
    %cst_16 = arith.constant 0.000000e+00 : f32
    %17 = vector.broadcast %cst_16 : f32 to vector<32x8xf32>
    %18 = arith.maximumf %16, %17 : vector<32x8xf32>
    %c0_17 = arith.constant 0 : index
    %c0_18 = arith.constant 0 : index
    %19 = vector.load %arg8[%c0_17, %c0_18] : memref<1x32xf32, #tpu.memory_space<vmem>>, vector<1x32xf32>
    %cst_19 = arith.constant dense<0.000000e+00> : vector<1x8xf32>
    %20 = tpu.matmul %19, %18, %cst_19 {dimension_numbers = #tpu.dot_dimension_numbers<[1], [0], [0], [1], [0, 0, 1, 1], [], []>} : vector<1x32xf32>, vector<32x8xf32>, vector<1x8xf32> -> vector<1x8xf32>
    %c0_20 = arith.constant 0 : index
    %c0_21 = arith.constant 0 : index
    %21 = vector.load %arg9[%c0_20, %c0_21] : memref<1x1xf32, #tpu.memory_space<vmem>>, vector<1x1xf32>
    %22 = vector.broadcast %21 : vector<1x1xf32> to vector<1x8xf32>
    %23 = arith.addf %20, %22 : vector<1x8xf32>
    %c0_22 = arith.constant 0 : index
    %c0_23 = arith.constant 0 : index
    %24 = vector.load %arg10[%c0_22, %c0_23] : memref<1x8xf32, #tpu.memory_space<vmem>>, vector<1x8xf32>
    tpu.vector_store %arg10[%c0_22, %c0_23], %23 {strides = array<i32>} : memref<1x8xf32, #tpu.memory_space<vmem>>, vector<1x8xf32>,
    return
  }
  func.func @transform_0(%arg0: i32) -> (i32, i32) {
    %c0_i32 = arith.constant 0 : i32
    %c0_i32_0 = arith.constant 0 : i32
    return %c0_i32, %arg0 : i32, i32
  }
  func.func @transform_1(%arg0: i32) -> (i32, i32) {
    %c0_i32 = arith.constant 0 : i32
    %c0_i32_0 = arith.constant 0 : i32
    return %c0_i32, %arg0 : i32, i32
  }
  func.func @transform_2(%arg0: i32) -> (i32, i32) {
    %c0_i32 = arith.constant 0 : i32
    %c0_i32_0 = arith.constant 0 : i32
    %c0_i32_1 = arith.constant 0 : i32
    return %c0_i32, %c0_i32_0 : i32, i32
  }
  func.func @transform_3(%arg0: i32) -> (i32, i32) {
    %c0_i32 = arith.constant 0 : i32
    %c0_i32_0 = arith.constant 0 : i32
    %c0_i32_1 = arith.constant 0 : i32
    return %c0_i32, %c0_i32_0 : i32, i32
  }
  func.func @transform_4(%arg0: i32) -> (i32, i32) {
    %c0_i32 = arith.constant 0 : i32
    %c0_i32_0 = arith.constant 0 : i32
    %c0_i32_1 = arith.constant 0 : i32
    return %c0_i32, %c0_i32_0 : i32, i32
  }
  func.func @transform_5(%arg0: i32) -> (i32, i32) {
    %c0_i32 = arith.constant 0 : i32
    %c0_i32_0 = arith.constant 0 : i32
    %c0_i32_1 = arith.constant 0 : i32
    return %c0_i32, %c0_i32_0 : i32, i32
  }
  func.func @transform_6(%arg0: i32) -> (i32, i32) {
    %c0_i32 = arith.constant 0 : i32
    %c0_i32_0 = arith.constant 0 : i32
    %c0_i32_1 = arith.constant 0 : i32
    return %c0_i32, %c0_i32_0 : i32, i32
  }
  func.func @transform_7(%arg0: i32) -> (i32, i32) {
    %c0_i32 = arith.constant 0 : i32
    %c0_i32_0 = arith.constant 0 : i32
    %c0_i32_1 = arith.constant 0 : i32
    return %c0_i32, %c0_i32_0 : i32, i32
  }
  func.func @transform_8(%arg0: i32) -> (i32, i32) {
    %c0_i32 = arith.constant 0 : i32
    %c0_i32_0 = arith.constant 0 : i32
    %c0_i32_1 = arith.constant 0 : i32
    return %c0_i32, %c0_i32_0 : i32, i32
  }
  func.func @transform_9(%arg0: i32) -> (i32, i32) {
    %c0_i32 = arith.constant 0 : i32
    %c0_i32_0 = arith.constant 0 : i32
    return %c0_i32, %arg0 : i32, i32
  }
}

</mosaic_0001>

<llo_original>
// kernel: critic_forward.1
$region0: #{critic_forward.1}
  #allocation0 [shape = 'u32[]', space=smem, size = 0x4, offset = 0x4, fixed_abs, tag = 'smem constant byte address 0x4 - core index']
  #allocation1 [shape = 'u32[144,128]{1,0:T(1,128)}', space=vmem, size = 0x12000, scoped, tag = 'internal scratch']
  #allocation2 [shape = 'f32[1,1]{1,0:T(1,128)S(1)}', space=vmem, size = 0x200, scoped, tag = 'scoped memory for critic_forward.1']
  %s0 = inlined_call_operand.vmem [shape: f32[16,8], index: 0, kind: input, shape index: {}]
  %s1 = inlined_call_operand.vmem [shape: f32[4,8], index: 1, kind: input, shape index: {}]
  %s2 = inlined_call_operand.vmem [shape: f32[32,16], index: 2, kind: input, shape index: {}]
  %s3 = inlined_call_operand.vmem [shape: f32[32,4], index: 3, kind: input, shape index: {}]
  %s4 = inlined_call_operand.vmem [shape: f32[32,1], index: 4, kind: input, shape index: {}]
  %s5 = inlined_call_operand.vmem [shape: f32[32,32], index: 5, kind: input, shape index: {}]
  %s6 = inlined_call_operand.vmem [shape: f32[32,1], index: 6, kind: input, shape index: {}]
  %s7 = inlined_call_operand.vmem [shape: f32[1,32], index: 7, kind: input, shape index: {}]
  %s8 = inlined_call_operand.<no memory space> [shape: f32[1,1], index: 8, kind: input, shape index: {}]
  %s9 = inlined_call_operand.hbm [shape: f32[1,8], index: 9, kind: output, shape index: {}]
  %s10 = sld [smem:[#allocation0]]
  $region46: #{critic_forward.1} parent=0
    _
  %s12 = ssub.s32 1, %s10
  %s13 = scalar_select 0, %s12, %s10
  %v14 = vstv %s8
  %15 = vst [vmem:[#allocation2] sm:$0x1] %v14
  $region1: #{critic_forward.1} parent=0
    #allocation3 [shape = 'u8[512]{0}', space=vmem, size = 0x400, scoped, tag = 'output window, operand 0, single buffered']
    #allocation4 [shape = 's32[1]{0}', space=sflag, size = 0x4, scoped, tag = 'scoped memory for critic_forward.1']
    %16 = vsyncpa [#allocation4], 0
    // Predicated region
    $region2: #{critic_forward.1} parent=1 // pred_check
      _
    $region3: #{critic_forward.1} parent=1 // pred_check_branch
      %18 = sbr.rel (0) target = $region5
    $region4: #{critic_forward.1} parent=1 // pred_region
      _
    $region5: #{critic_forward.1} parent=1 // pred_fallthru
      _
    // Predicated region
    $region6: #{critic_forward.1} parent=1 // pred_check
      _
    $region7: #{critic_forward.1} parent=1 // pred_check_branch
      %20 = sbr.rel (0) target = $region9
    $region8: #{critic_forward.1} parent=1 // pred_region
      _
    $region9: #{critic_forward.1} parent=1 // pred_fallthru
      _
    // Predicated region
    $region10: #{critic_forward.1} parent=1 // pred_check
      _
    $region11: #{critic_forward.1} parent=1 // pred_check_branch
      %22 = sbr.rel (0) target = $region13
    $region12: #{critic_forward.1} parent=1 // pred_region
      _
    $region13: #{critic_forward.1} parent=1 // pred_fallthru
      _
    // Predicated region
    $region14: #{critic_forward.1} parent=1 // pred_check
      _
    $region15: #{critic_forward.1} parent=1 // pred_check_branch
      %24 = sbr.rel (0) target = $region17
    $region16: #{critic_forward.1} parent=1 // pred_region
      _
    $region17: #{critic_forward.1} parent=1 // pred_fallthru
      _
    // Predicated region
    $region18: #{critic_forward.1} parent=1 // pred_check
      _
    $region19: #{critic_forward.1} parent=1 // pred_check_branch
      %26 = sbr.rel (0) target = $region21
    $region20: #{critic_forward.1} parent=1 // pred_region
      _
    $region21: #{critic_forward.1} parent=1 // pred_fallthru
      _
    // Predicated region
    $region22: #{critic_forward.1} parent=1 // pred_check
      _
    $region23: #{critic_forward.1} parent=1 // pred_check_branch
      %28 = sbr.rel (0) target = $region25
    $region24: #{critic_forward.1} parent=1 // pred_region
      _
    $region25: #{critic_forward.1} parent=1 // pred_fallthru
      _
    // Predicated region
    $region26: #{critic_forward.1} parent=1 // pred_check
      _
    $region27: #{critic_forward.1} parent=1 // pred_check_branch
      %30 = sbr.rel (0) target = $region29
    $region28: #{critic_forward.1} parent=1 // pred_region
      _
    $region29: #{critic_forward.1} parent=1 // pred_fallthru
      _
    // Predicated region
    $region30: #{critic_forward.1} parent=1 // pred_check
      _
    $region31: #{critic_forward.1} parent=1 // pred_check_branch
      %32 = sbr.rel (0) target = $region33
    $region32: #{critic_forward.1} parent=1 // pred_region
      _
    $region33: #{critic_forward.1} parent=1 // pred_fallthru
      _
    // Predicated region
    $region34: #{critic_forward.1} parent=1 // pred_check
      _
    $region35: #{critic_forward.1} parent=1 // pred_check_branch
      %34 = sbr.rel (0) target = $region37
    $region36: #{critic_forward.1} parent=1 // pred_region
      _
    $region37: #{critic_forward.1} parent=1 // pred_fallthru
      _
    %v35 = vld [vmem:[%s2] sm:$0xff]
    %v36 = vld [vmem:[%s2 + $0x8] sm:$0xff]
    %v37 = vld [vmem:[%s2 + $0x10] sm:$0xff]
    %v38 = vld [vmem:[%s2 + $0x18] sm:$0xff]
    %v39 = vld [vmem:[%s0] sm:$0xff]
    %v40 = vld [vmem:[%s0 + $0x8] sm:$0xff]
    %v41 = vld [vmem:[%s3] sm:$0xff]
    %v42 = vld [vmem:[%s3 + $0x8] sm:$0xff]
    %v43 = vld [vmem:[%s3 + $0x10] sm:$0xff]
    %v44 = vld [vmem:[%s3 + $0x18] sm:$0xff]
    %v45 = vld [vmem:[%s1] sm:$0xf]
    %vm46 = vcmask 31744
    %v48 = vsel %vm46, %v41, 0
    %v51 = vsel %vm46, %v42, 0
    %v54 = vsel %vm46, %v43, 0
    %v57 = vsel %vm46, %v44, 0
    %vm59 = vcmask 1043456
    %v61 = vsel %vm59, %v45, 0
    %63 = vmatprep.subr.mxu0 0.0
    %64 = vmatpush1.msra.mxu0 0.0
    %65 = vmatprep.subr.mxu0 0.0
    %66 = vmatpush1.msra.mxu0 0.0
    %67 = vmatprep.subr.mxu0 0.0
    %68 = vmatpush1.msra.mxu0 0.0
    %69 = vmatprep.subr.mxu0 0.0
    %70 = vmatpush1.msra.mxu0 0.0
    %71 = vmatprep.subr.mxu0 0.0
    %72 = vmatpush1.msra.mxu0 0.0
    %73 = vmatprep.subr.mxu0 0.0
    %74 = vmatpush1.msra.mxu0 0.0
    %75 = vmatprep.subr.mxu0 0.0
    %76 = vmatpush1.msra.mxu0 0.0
    %77 = vmatprep.subr.mxu0 0.0
    %78 = vmatpush1.msra.mxu0 0.0
    %79 = vmatprep.subr.mxu0 0.0
    %80 = vmatpush1.msra.mxu0 0.0
    %81 = vmatprep.subr.mxu0 0.0
    %82 = vmatpush1.msra.mxu0 0.0
    %83 = vmatprep.subr.mxu0 0.0
    %84 = vmatpush1.msra.mxu0 0.0
    %85 = vmatprep.subr.mxu0 0.0
    %86 = vmatpush1.msra.mxu0 0.0
    %87 = vmatprep.subr.mxu0 0.0
    %88 = vmatpush1.msra.mxu0 0.0
    %89 = vmatprep.subr.mxu0 0.0
    %90 = vmatpush1.msra.mxu0 0.0
    %91 = vmatprep.subr.mxu0 0.0
    %92 = vmatpush1.msra.mxu0 0.0
    %93 = vmatprep.subr.mxu0 0.0
    %94 = vmatpush1.msra.mxu0 %v61
    %95 = vmatprep.subr.mxu0 0.0
    %96 = vmatpush2.msra.mxu0 0.0
    %97 = vmatprep.subr.mxu0 0.0
    %98 = vmatpush2.msra.mxu0 0.0
    %99 = vmatprep.subr.mxu0 0.0
    %100 = vmatpush2.msra.mxu0 0.0
    %101 = vmatprep.subr.mxu0 0.0
    %102 = vmatpush2.msra.mxu0 0.0
    %103 = vmatprep.subr.mxu0 0.0
    %104 = vmatpush2.msra.mxu0 0.0
    %105 = vmatprep.subr.mxu0 0.0
    %106 = vmatpush2.msra.mxu0 0.0
    %107 = vmatprep.subr.mxu0 0.0
    %108 = vmatpush2.msra.mxu0 0.0
    %109 = vmatprep.subr.mxu0 0.0
    %110 = vmatpush2.msra.mxu0 0.0
    %111 = vmatprep.subr.mxu0 0.0
    %112 = vmatpush2.msra.mxu0 0.0
    %113 = vmatprep.subr.mxu0 0.0
    %114 = vmatpush2.msra.mxu0 0.0
    %115 = vmatprep.subr.mxu0 0.0
    %116 = vmatpush2.msra.mxu0 0.0
    %117 = vmatprep.subr.mxu0 0.0
    %118 = vmatpush2.msra.mxu0 0.0
    %119 = vmatprep.subr.mxu0 0.0
    %120 = vmatpush2.msra.mxu0 0.0
    %121 = vmatprep.subr.mxu0 0.0
    %122 = vmatpush2.msra.mxu0 0.0
    %123 = vmatprep.subr.mxu0 0.0
    %124 = vmatpush2.msra.mxu0 0.0
    %125 = vmatprep.subr.mxu0 0.0
    %126 = vmatpush2.msra.mxu0 0.0
    %127 = vmatprep.mubr.f32.mxu0 0.0
    %128 = vmatmul.mubr.f32.gmra.mxu0 %v48
    %v129 = vpop.f32.mrf.mxu0
    %v130 = vadd.f32 0.0, %v129
    %v131 = vpop.f32.mrf.mxu0
    %132 = vmatprep.mubr.f32.mxu0 0.0
    %133 = vmatmul.mubr.f32.gmra.mxu0 %v51
    %v134 = vpop.f32.mrf.mxu0
    %v135 = vadd.f32 0.0, %v134
    %v136 = vpop.f32.mrf.mxu0
    %137 = vmatprep.mubr.f32.mxu0 0.0
    %138 = vmatmul.mubr.f32.gmra.mxu0 %v54
    %v139 = vpop.f32.mrf.mxu0
    %v140 = vadd.f32 0.0, %v139
    %v141 = vpop.f32.mrf.mxu0
    %142 = vmatprep.mubr.f32.mxu0 0.0
    %143 = vmatmul.mubr.f32.gmra.mxu0 %v57
    %v144 = vpop.f32.mrf.mxu0
    %v145 = vadd.f32 0.0, %v144
    %v146 = vpop.f32.mrf.mxu0
    %147 = vdwg.mxu0
    %vm148 = vcmask 130048
    %v150 = vsel %vm148, %v35, 0
    %v153 = vsel %vm148, %v36, 0
    %v156 = vsel %vm148, %v37, 0
    %v159 = vsel %vm148, %v38, 0
    %161 = vmatprep.subr.mxu0 0.0
    %162 = vmatpush1.msra.mxu0 0.0
    %163 = vmatprep.subr.mxu0 0.0
    %164 = vmatpush1.msra.mxu0 0.0
    %165 = vmatprep.subr.mxu0 0.0
    %166 = vmatpush1.msra.mxu0 0.0
    %167 = vmatprep.subr.mxu0 0.0
    %168 = vmatpush1.msra.mxu0 0.0
    %169 = vmatprep.subr.mxu0 0.0
    %170 = vmatpush1.msra.mxu0 0.0
    %171 = vmatprep.subr.mxu0 0.0
    %172 = vmatpush1.msra.mxu0 0.0
    %173 = vmatprep.subr.mxu0 0.0
    %174 = vmatpush1.msra.mxu0 0.0
    %175 = vmatprep.subr.mxu0 0.0
    %176 = vmatpush1.msra.mxu0 0.0
    %177 = vmatprep.subr.mxu0 0.0
    %178 = vmatpush1.msra.mxu0 0.0
    %179 = vmatprep.subr.mxu0 0.0
    %180 = vmatpush1.msra.mxu0 0.0
    %181 = vmatprep.subr.mxu0 0.0
    %182 = vmatpush1.msra.mxu0 0.0
    %183 = vmatprep.subr.mxu0 0.0
    %184 = vmatpush1.msra.mxu0 0.0
    %185 = vmatprep.subr.mxu0 0.0
    %186 = vmatpush1.msra.mxu0 0.0
    %187 = vmatprep.subr.mxu0 0.0
    %188 = vmatpush1.msra.mxu0 0.0
    %189 = vmatprep.subr.mxu0 0.0
    %190 = vmatpush1.msra.mxu0 %v40
    %191 = vmatprep.subr.mxu0 0.0
    %192 = vmatpush1.msra.mxu0 %v39
    %193 = vmatprep.subr.mxu0 0.0
    %194 = vmatpush2.msra.mxu0 0.0
    %195 = vmatprep.subr.mxu0 0.0
    %196 = vmatpush2.msra.mxu0 0.0
    %197 = vmatprep.subr.mxu0 0.0
    %198 = vmatpush2.msra.mxu0 0.0
    %199 = vmatprep.subr.mxu0 0.0
    %200 = vmatpush2.msra.mxu0 0.0
    %201 = vmatprep.subr.mxu0 0.0
    %202 = vmatpush2.msra.mxu0 0.0
    %203 = vmatprep.subr.mxu0 0.0
    %204 = vmatpush2.msra.mxu0 0.0
    %205 = vmatprep.subr.mxu0 0.0
    %206 = vmatpush2.msra.mxu0 0.0
    %207 = vmatprep.subr.mxu0 0.0
    %208 = vmatpush2.msra.mxu0 0.0
    %209 = vmatprep.subr.mxu0 0.0
    %210 = vmatpush2.msra.mxu0 0.0
    %211 = vmatprep.subr.mxu0 0.0
    %212 = vmatpush2.msra.mxu0 0.0
    %213 = vmatprep.subr.mxu0 0.0
    %214 = vmatpush2.msra.mxu0 0.0
    %215 = vmatprep.subr.mxu0 0.0
    %216 = vmatpush2.msra.mxu0 0.0
    %217 = vmatprep.subr.mxu0 0.0
    %218 = vmatpush2.msra.mxu0 0.0
    %219 = vmatprep.subr.mxu0 0.0
    %220 = vmatpush2.msra.mxu0 0.0
    %221 = vmatprep.subr.mxu0 0.0
    %222 = vmatpush2.msra.mxu0 0.0
    %223 = vmatprep.subr.mxu0 0.0
    %224 = vmatpush2.msra.mxu0 0.0
    %225 = vmatprep.mubr.f32.mxu0 0.0
    %226 = vmatmul.mubr.f32.gmra.mxu0 %v150
    %v227 = vpop.f32.mrf.mxu0
    %v228 = vadd.f32 %v130, %v227
    %v229 = vpop.f32.mrf.mxu0
    %230 = vmatprep.mubr.f32.mxu0 0.0
    %231 = vmatmul.mubr.f32.gmra.mxu0 %v153
    %v232 = vpop.f32.mrf.mxu0
    %v233 = vadd.f32 %v135, %v232
    %v234 = vpop.f32.mrf.mxu0
    %235 = vmatprep.mubr.f32.mxu0 0.0
    %236 = vmatmul.mubr.f32.gmra.mxu0 %v156
    %v237 = vpop.f32.mrf.mxu0
    %v238 = vadd.f32 %v140, %v237
    %v239 = vpop.f32.mrf.mxu0
    %240 = vmatprep.mubr.f32.mxu0 0.0
    %241 = vmatmul.mubr.f32.gmra.mxu0 %v159
    %v242 = vpop.f32.mrf.mxu0
    %v243 = vadd.f32 %v145, %v242
    %v244 = vpop.f32.mrf.mxu0
    %245 = vdwg.mxu0
    %v246 = vld [vmem:[%s4] sm:$0xff]
    %v247 = vld [vmem:[%s4 + $0x8] sm:$0xff]
    %v248 = vld [vmem:[%s4 + $0x10] sm:$0xff]
    %v249 = vld [vmem:[%s4 + $0x18] sm:$0xff]
    %251 = vset.pattern.permute.xlu0 0
    %252 = vperm.xlu0 %251, %v246
    %v253 = vpop.permute.xlu0 %252
    %256 = vset.pattern.permute.xlu0 0
    %257 = vperm.xlu0 %256, %v247
    %v258 = vpop.permute.xlu0 %257
    %261 = vset.pattern.permute.xlu0 0
    %262 = vperm.xlu0 %261, %v248
    %v263 = vpop.permute.xlu0 %262
    %266 = vset.pattern.permute.xlu0 0
    %267 = vperm.xlu0 %266, %v249
    %v268 = vpop.permute.xlu0 %267
    %v270 = vadd.f32 %v228, %v253
    %v271 = vadd.f32 %v233, %v258
    %v272 = vadd.f32 %v238, %v263
    %v273 = vadd.f32 %v243, %v268
    %v274 = vmax.f32 %v270, 0.0
    %v275 = vmax.f32 %v271, 0.0
    %v276 = vmax.f32 %v272, 0.0
    %v277 = vmax.f32 %v273, 0.0
    %v278 = vld [vmem:[%s5] sm:$0xff]
    %v279 = vld [vmem:[%s5 + $0x8] sm:$0xff]
    %v280 = vld [vmem:[%s5 + $0x10] sm:$0xff]
    %v281 = vld [vmem:[%s5 + $0x18] sm:$0xff]
    %v282 = vld [vmem:[%s6] sm:$0xff]
    %v283 = vld [vmem:[%s6 + $0x8] sm:$0xff]
    %v284 = vld [vmem:[%s6 + $0x10] sm:$0xff]
    %v285 = vld [vmem:[%s6 + $0x18] sm:$0xff]
    %287 = vset.pattern.permute.xlu0 0
    %288 = vperm.xlu0 %287, %v282
    %v289 = vpop.permute.xlu0 %288
    %292 = vset.pattern.permute.xlu0 0
    %293 = vperm.xlu0 %292, %v283
    %v294 = vpop.permute.xlu0 %293
    %297 = vset.pattern.permute.xlu0 0
    %298 = vperm.xlu0 %297, %v284
    %v299 = vpop.permute.xlu0 %298
    %302 = vset.pattern.permute.xlu0 0
    %303 = vperm.xlu0 %302, %v285
    %v304 = vpop.permute.xlu0 %303
    %vm306 = vcmask 261120
    %v308 = vsel %vm306, %v278, 0
    %v311 = vsel %vm306, %v279, 0
    %v314 = vsel %vm306, %v280, 0
    %v317 = vsel %vm306, %v281, 0
    %319 = vmatprep.subr.mxu0 0.0
    %320 = vmatpush1.msra.mxu0 0.0
    %321 = vmatprep.subr.mxu0 0.0
    %322 = vmatpush1.msra.mxu0 0.0
    %323 = vmatprep.subr.mxu0 0.0
    %324 = vmatpush1.msra.mxu0 0.0
    %325 = vmatprep.subr.mxu0 0.0
    %326 = vmatpush1.msra.mxu0 0.0
    %327 = vmatprep.subr.mxu0 0.0
    %328 = vmatpush1.msra.mxu0 0.0
    %329 = vmatprep.subr.mxu0 0.0
    %330 = vmatpush1.msra.mxu0 0.0
    %331 = vmatprep.subr.mxu0 0.0
    %332 = vmatpush1.msra.mxu0 0.0
    %333 = vmatprep.subr.mxu0 0.0
    %334 = vmatpush1.msra.mxu0 0.0
    %335 = vmatprep.subr.mxu0 0.0
    %336 = vmatpush1.msra.mxu0 0.0
    %337 = vmatprep.subr.mxu0 0.0
    %338 = vmatpush1.msra.mxu0 0.0
    %339 = vmatprep.subr.mxu0 0.0
    %340 = vmatpush1.msra.mxu0 0.0
    %341 = vmatprep.subr.mxu0 0.0
    %342 = vmatpush1.msra.mxu0 0.0
    %343 = vmatprep.subr.mxu0 0.0
    %344 = vmatpush1.msra.mxu0 %v277
    %345 = vmatprep.subr.mxu0 0.0
    %346 = vmatpush1.msra.mxu0 %v276
    %347 = vmatprep.subr.mxu0 0.0
    %348 = vmatpush1.msra.mxu0 %v275
    %349 = vmatprep.subr.mxu0 0.0
    %350 = vmatpush1.msra.mxu0 %v274
    %351 = vmatprep.subr.mxu0 0.0
    %352 = vmatpush2.msra.mxu0 0.0
    %353 = vmatprep.subr.mxu0 0.0
    %354 = vmatpush2.msra.mxu0 0.0
    %355 = vmatprep.subr.mxu0 0.0
    %356 = vmatpush2.msra.mxu0 0.0
    %357 = vmatprep.subr.mxu0 0.0
    %358 = vmatpush2.msra.mxu0 0.0
    %359 = vmatprep.subr.mxu0 0.0
    %360 = vmatpush2.msra.mxu0 0.0
    %361 = vmatprep.subr.mxu0 0.0
    %362 = vmatpush2.msra.mxu0 0.0
    %363 = vmatprep.subr.mxu0 0.0
    %364 = vmatpush2.msra.mxu0 0.0
    %365 = vmatprep.subr.mxu0 0.0
    %366 = vmatpush2.msra.mxu0 0.0
    %367 = vmatprep.subr.mxu0 0.0
    %368 = vmatpush2.msra.mxu0 0.0
    %369 = vmatprep.subr.mxu0 0.0
    %370 = vmatpush2.msra.mxu0 0.0
    %371 = vmatprep.subr.mxu0 0.0
    %372 = vmatpush2.msra.mxu0 0.0
    %373 = vmatprep.subr.mxu0 0.0
    %374 = vmatpush2.msra.mxu0 0.0
    %375 = vmatprep.subr.mxu0 0.0
    %376 = vmatpush2.msra.mxu0 0.0
    %377 = vmatprep.subr.mxu0 0.0
    %378 = vmatpush2.msra.mxu0 0.0
    %379 = vmatprep.subr.mxu0 0.0
    %380 = vmatpush2.msra.mxu0 0.0
    %381 = vmatprep.subr.mxu0 0.0
    %382 = vmatpush2.msra.mxu0 0.0
    %383 = vmatprep.mubr.f32.mxu0 0.0
    %384 = vmatmul.mubr.f32.gmra.mxu0 %v308
    %v385 = vpop.f32.mrf.mxu0
    %v386 = vadd.f32 %v289, %v385
    %v387 = vpop.f32.mrf.mxu0
    %388 = vmatprep.mubr.f32.mxu0 0.0
    %389 = vmatmul.mubr.f32.gmra.mxu0 %v311
    %v390 = vpop.f32.mrf.mxu0
    %v391 = vadd.f32 %v294, %v390
    %v392 = vpop.f32.mrf.mxu0
    %393 = vmatprep.mubr.f32.mxu0 0.0
    %394 = vmatmul.mubr.f32.gmra.mxu0 %v314
    %v395 = vpop.f32.mrf.mxu0
    %v396 = vadd.f32 %v299, %v395
    %v397 = vpop.f32.mrf.mxu0
    %398 = vmatprep.mubr.f32.mxu0 0.0
    %399 = vmatmul.mubr.f32.gmra.mxu0 %v317
    %v400 = vpop.f32.mrf.mxu0
    %v401 = vadd.f32 %v304, %v400
    %v402 = vpop.f32.mrf.mxu0
    %403 = vdwg.mxu0
    %v404 = vmax.f32 %v386, 0.0
    %v405 = vmax.f32 %v391, 0.0
    %v406 = vmax.f32 %v396, 0.0
    %v407 = vmax.f32 %v401, 0.0
    %v408 = vld [vmem:[%s7] sm:$0x1]
    %v409 = vld [vmem:[#allocation2] sm:$0x1]
    %411 = vset.pattern.permute.xlu0 0
    %412 = vperm.xlu0 %411, %v409
    %v413 = vpop.permute.xlu0 %412
    %v415 = vlaneseq
    %v416 = vshrl.u32 %v415, 7
    %v417 = vsub.s32 0, %v416
    %v418 = vrot.slane %v413, %v417
    %v420 = vsel %vm306, %v408, 0
    %422 = vmatprep.subr.mxu0 0.0
    %423 = vmatpush1.msra.mxu0 0.0
    %424 = vmatprep.subr.mxu0 0.0
    %425 = vmatpush1.msra.mxu0 0.0
    %426 = vmatprep.subr.mxu0 0.0
    %427 = vmatpush1.msra.mxu0 0.0
    %428 = vmatprep.subr.mxu0 0.0
    %429 = vmatpush1.msra.mxu0 0.0
    %430 = vmatprep.subr.mxu0 0.0
    %431 = vmatpush1.msra.mxu0 0.0
    %432 = vmatprep.subr.mxu0 0.0
    %433 = vmatpush1.msra.mxu0 0.0
    %434 = vmatprep.subr.mxu0 0.0
    %435 = vmatpush1.msra.mxu0 0.0
    %436 = vmatprep.subr.mxu0 0.0
    %437 = vmatpush1.msra.mxu0 0.0
    %438 = vmatprep.subr.mxu0 0.0
    %439 = vmatpush1.msra.mxu0 0.0
    %440 = vmatprep.subr.mxu0 0.0
    %441 = vmatpush1.msra.mxu0 0.0
    %442 = vmatprep.subr.mxu0 0.0
    %443 = vmatpush1.msra.mxu0 0.0
    %444 = vmatprep.subr.mxu0 0.0
    %445 = vmatpush1.msra.mxu0 0.0
    %446 = vmatprep.subr.mxu0 0.0
    %447 = vmatpush1.msra.mxu0 %v407
    %448 = vmatprep.subr.mxu0 0.0
    %449 = vmatpush1.msra.mxu0 %v406
    %450 = vmatprep.subr.mxu0 0.0
    %451 = vmatpush1.msra.mxu0 %v405
    %452 = vmatprep.subr.mxu0 0.0
    %453 = vmatpush1.msra.mxu0 %v404
    %454 = vmatprep.subr.mxu0 0.0
    %455 = vmatpush2.msra.mxu0 0.0
    %456 = vmatprep.subr.mxu0 0.0
    %457 = vmatpush2.msra.mxu0 0.0
    %458 = vmatprep.subr.mxu0 0.0
    %459 = vmatpush2.msra.mxu0 0.0
    %460 = vmatprep.subr.mxu0 0.0
    %461 = vmatpush2.msra.mxu0 0.0
    %462 = vmatprep.subr.mxu0 0.0
    %463 = vmatpush2.msra.mxu0 0.0
    %464 = vmatprep.subr.mxu0 0.0
    %465 = vmatpush2.msra.mxu0 0.0
    %466 = vmatprep.subr.mxu0 0.0
    %467 = vmatpush2.msra.mxu0 0.0
    %468 = vmatprep.subr.mxu0 0.0
    %469 = vmatpush2.msra.mxu0 0.0
    %470 = vmatprep.subr.mxu0 0.0
    %471 = vmatpush2.msra.mxu0 0.0
    %472 = vmatprep.subr.mxu0 0.0
    %473 = vmatpush2.msra.mxu0 0.0
    %474 = vmatprep.subr.mxu0 0.0
    %475 = vmatpush2.msra.mxu0 0.0
    %476 = vmatprep.subr.mxu0 0.0
    %477 = vmatpush2.msra.mxu0 0.0
    %478 = vmatprep.subr.mxu0 0.0
    %479 = vmatpush2.msra.mxu0 0.0
    %480 = vmatprep.subr.mxu0 0.0
    %481 = vmatpush2.msra.mxu0 0.0
    %482 = vmatprep.subr.mxu0 0.0
    %483 = vmatpush2.msra.mxu0 0.0
    %484 = vmatprep.subr.mxu0 0.0
    %485 = vmatpush2.msra.mxu0 0.0
    %486 = vmatprep.mubr.f32.mxu0 0.0
    %487 = vmatmul.mubr.f32.gmra.mxu0 %v420
    %v488 = vpop.f32.mrf.mxu0
    %v489 = vadd.f32 %v418, %v488
    %v490 = vpop.f32.mrf.mxu0
    %491 = vdwg.mxu0
    %vm492 = vcmask 57344
    %493 = vst.msk [vmem:[#allocation3] sm:$0x1] %vm492, %v489
    // Predicated region
    $region38: #{critic_forward.1} parent=1 // pred_check
      _
    $region39: #{critic_forward.1} parent=1 // pred_check_branch
      %495 = sbr.rel (0) target = $region41
    $region40: #{critic_forward.1} parent=1 // pred_region
      %s497 = ssub.s32 16, 16
      %498 = vsyncadd [#allocation4], %s497
      %s500 = sshll.u32 [#allocation3], 4
      %s501 = int_to_ptr.vmem [resolvable:$true] %s500
      %503 = dma.vmem_to_hbm [thread:$0]  %s501, 16, %s9, [#allocation4]
    $region41: #{critic_forward.1} parent=1 // pred_fallthru
      _
    // Predicated region
    $region42: #{critic_forward.1} parent=1 // pred_check
      _
    $region43: #{critic_forward.1} parent=1 // pred_check_branch
      %505 = sbr.rel (0) target = $region45
    $region44: #{critic_forward.1} parent=1 // pred_region
      %506 = dma.done [#allocation4], 16
    $region45: #{critic_forward.1} parent=1 // pred_fallthru
      _
    %507 = vsyncpa [#allocation4], 1

</llo_original>
